<compile_context>
chip_gen: v6e
topology: v6e:2x2x1
jax: 0.10.0
libtpu: 0.0.40
codegen_flags: <defaults>
</compile_context>

<pallas_src>
import functools

import jax
import jax.numpy as jnp
from jax.experimental import pallas as pl
from jax.experimental.pallas import tpu as pltpu


def _round_up(x, m):
    return (x + m - 1) // m * m


def _vmem_budget_bytes():
    # Generation-aware scoped-VMEM limit: ~48 MiB on v7x (64 MiB physical),
    # up to 96 MiB on v5e/v6e (128 MiB physical).
    cap = 64 * 1024 * 1024
    try:
        info = pltpu.get_tpu_info()
        cap = int(getattr(info, "vmem_capacity_bytes", cap))
    except Exception:
        pass
    return int(min(cap * 3 // 4, 96 * 1024 * 1024))


def _choose_n_tile(n_total, cap=2048):
    # Largest multiple of 128 that divides n_total and is <= cap.
    t = min(n_total, cap)
    while n_total % t:
        t -= 128
    return t


# ---------------------------------------------------------------------------
# im2col (XLA side, bf16): (B, C, H, W) -> (B, H*W, C*9) for a 3x3 SAME conv.
# ---------------------------------------------------------------------------
def im2col_3x3_same(x_nchw):
    B, C, H, W = x_nchw.shape
    xp = jnp.pad(x_nchw, ((0, 0), (0, 0), (1, 1), (1, 1)))
    cols = [xp[:, :, di:di + H, dj:dj + W] for di in range(3) for dj in range(3)]
    patches = jnp.stack(cols, axis=2)            # (B, C, 9, H, W)
    patches = patches.transpose(0, 3, 4, 1, 2)   # (B, H, W, C, 9)
    return patches.reshape(B, H * W, C * 9)      # (B, HW, C*9)


# ---------------------------------------------------------------------------
# Kernel 1: fused dual-backbone  conv(im2col matmul, bias folded) + ReLU + pool.
# Grid = (B, N_tiles, HW_tiles); HW innermost ("arbitrary") with an (8, n_tile)
# f32 accumulator and pl.when init/finalize.
# ---------------------------------------------------------------------------
def _backbone_pool_kernel(x_ref, w_ref, o_ref, acc_ref, *, inv_hw):
    h = pl.program_id(2)

    @pl.when(h == 0)
    def _init():
        acc_ref[...] = jnp.zeros_like(acc_ref)

    x = x_ref[0]                                                      # (hw_tile, K_PAD) bf16
    # Bias is folded into w (ones column in x), so the matmul output already
    # includes it: no per-step VPU bias add.
    z = jnp.dot(x, w_ref[...], preferred_element_type=jnp.float32)    # MXU, f32 acc
    z = jnp.maximum(z, 0.0)                                            # ReLU (f32 epilogue)
    # Sublane-blocked partial pool: pure VPU adds; no per-step XLU reduce.
    acc_ref[...] += z.reshape(-1, 8, z.shape[-1]).sum(axis=0)          # (8, n_tile)

    @pl.when(h == pl.num_programs(2) - 1)
    def _finalize():
        pooled = jnp.sum(acc_ref[...], axis=0, keepdims=True) * inv_hw  # single XLU reduce
        o_ref[...] = pooled.reshape(o_ref.shape)                        # global avg pool


def fused_backbone_pool(patches, w_fused, *, hw, hw_tile, n_tile, vmem_limit):
    B, HW_PAD, K_PAD = patches.shape
    Kw, N = w_fused.shape
    assert Kw == K_PAD
    assert HW_PAD % hw_tile == 0 and N % n_tile == 0
    num_hw = HW_PAD // hw_tile
    num_n = N // n_tile

    flops = 2 * B * HW_PAD * K_PAD * N
    bytes_accessed = (patches.size * patches.dtype.itemsize
                      + w_fused.size * w_fused.dtype.itemsize
                      + B * N * 4)

    return pl.pallas_call(
        functools.partial(_backbone_pool_kernel, inv_hw=1.0 / hw),
        out_shape=jax.ShapeDtypeStruct((B, 1, N), jnp.float32),
        grid_spec=pltpu.PrefetchScalarGridSpec(
            num_scalar_prefetch=0,
            grid=(B, num_n, num_hw),
            in_specs=[
                pl.BlockSpec((1, hw_tile, K_PAD), lambda b, n, h: (b, h, 0)),
                # Resident fused weights (bias row included): single-buffered.
                pl.BlockSpec((K_PAD, n_tile), lambda b, n, h: (0, n),
                             pipeline_mode=pl.Buffered(1)),
            ],
            out_specs=pl.BlockSpec((1, 1, n_tile), lambda b, n, h: (b, 0, n)),
            scratch_shapes=[pltpu.VMEM((8, n_tile), jnp.float32)],
        ),
        compiler_params=pltpu.CompilerParams(
            dimension_semantics=("parallel", "parallel", "arbitrary"),
            vmem_limit_bytes=vmem_limit,
        ),
        cost_estimate=pl.CostEstimate(
            flops=int(flops), transcendentals=0, bytes_accessed=int(bytes_accessed)),
    )(patches, w_fused)


# ---------------------------------------------------------------------------
# Kernel 2: fused ensemble head
#   x2 = input_cnn.fc(f2);  out = relu(cat(x1, x2)) @ clf_w + clf_b
# with clf_w split into top (FEAT rows) / bottom (add_data_dim rows) halves.
# All shapes padded to 128 lanes; padded rows/cols are zero.
# ---------------------------------------------------------------------------
def _ensemble_head_kernel(pool_ref, fc_w_ref, fc_b_ref, w_top_ref, w_bot_ref,
                          clf_b_ref, o_ref, *, feat_pad):
    pooled = pool_ref[...]                         # (B, 2*feat_pad) f32
    x1 = pooled[:, :feat_pad]                      # cnn features (padded cols = 0)
    f2 = pooled[:, feat_pad:]                      # input_cnn features (padded cols = 0)
    x2 = jnp.dot(f2.astype(jnp.bfloat16), fc_w_ref[...],
                 preferred_element_type=jnp.float32) + fc_b_ref[...]
    r1 = jnp.maximum(x1, 0.0).astype(jnp.bfloat16)
    r2 = jnp.maximum(x2, 0.0).astype(jnp.bfloat16)
    o_ref[...] = (jnp.dot(r1, w_top_ref[...], preferred_element_type=jnp.float32)
                  + jnp.dot(r2, w_bot_ref[...], preferred_element_type=jnp.float32)
                  + clf_b_ref[...])


def ensemble_head(pooled, fc_w, fc_b, w_top, w_bot, clf_b, *, feat_pad, vmem_limit):
    B = pooled.shape[0]
    cls_pad = w_top.shape[1]
    vspec = pl.BlockSpec(memory_space=pltpu.MemorySpace.VMEM)
    return pl.pallas_call(
        functools.partial(_ensemble_head_kernel, feat_pad=feat_pad),
        out_shape=jax.ShapeDtypeStruct((B, cls_pad), jnp.float32),
        in_specs=[vspec] * 6,
        out_specs=vspec,
        compiler_params=pltpu.CompilerParams(vmem_limit_bytes=vmem_limit),
    )(pooled, fc_w, fc_b, w_top, w_bot, clf_b)


# ---------------------------------------------------------------------------
# EnsembleModel forward (eval / inference path)
# ---------------------------------------------------------------------------
def ensemble_forward(image, params):
    B, C, H, W = image.shape
    HW = H * W
    K = C * 9
    FEAT = params["cnn_conv_w"].shape[1]
    ADD = params["in_fc_w"].shape[1]
    CLS = params["clf_w"].shape[1]

    K_PAD = _round_up(K + 1, 8)        # +1: folded bias row (ones column in patches)
    FEAT_PAD = _round_up(FEAT, 128)    # per-backbone lane-dense feature block
    ADD_PAD = _round_up(ADD, 128)
    CLS_PAD = _round_up(CLS, 128)
    N_TOTAL = 2 * FEAT_PAD

    vmem_limit = _vmem_budget_bytes()
    hw_cap = 1024 if vmem_limit >= 64 * 1024 * 1024 else 512
    hw_tile = min(hw_cap, _round_up(HW, 128))
    HW_PAD = _round_up(HW, hw_tile)    # pad + mask instead of full-HW fallback
    n_tile = _choose_n_tile(N_TOTAL)

    # ---- im2col (XLA side) in bf16; ones column for the folded bias; padded
    #      HW rows are exact zeros (ones column included) so they pool to 0 ----
    # TODO(synk): build the 3x3 patches in-kernel from the raw NHWC image
    # (halo'd row tiles via manual DMA) so only 1x the image is read from HBM.
    patches = im2col_3x3_same(image.astype(jnp.bfloat16))              # (B, HW, K) bf16
    patches = jnp.concatenate(
        [patches, jnp.ones((B, HW, 1), jnp.bfloat16)], axis=-1)        # bias column
    patches = jnp.pad(patches, ((0, 0), (0, HW_PAD - HW), (0, K_PAD - (K + 1))))

    # ---- fuse both backbone conv weights (bias folded into row K) ----
    def _fold(wc, bc):
        w = jnp.zeros((K_PAD, FEAT_PAD), jnp.float32)
        w = w.at[:K, :FEAT].set(wc)
        w = w.at[K, :FEAT].set(bc.reshape(-1))                         # folded bias row
        return w

    w_fused = jnp.concatenate(
        [_fold(params["cnn_conv_w"], params["cnn_conv_b"]),
         _fold(params["in_conv_w"], params["in_conv_b"])],
        axis=1).astype(jnp.bfloat16)                                   # (K_PAD, 2*FEAT_PAD)

    pooled = fused_backbone_pool(patches, w_fused, hw=HW, hw_tile=hw_tile,
                                 n_tile=n_tile, vmem_limit=vmem_limit)  # (B, 1, N_TOTAL)
    pooled = pooled.reshape(B, N_TOTAL)

    # ---- fused ensemble head: input_cnn.fc + concat + relu + classifier ----
    fc_w = jnp.pad(params["in_fc_w"],
                   ((0, FEAT_PAD - FEAT), (0, ADD_PAD - ADD))).astype(jnp.bfloat16)
    fc_b = jnp.pad(params["in_fc_b"], ((0, 0), (0, ADD_PAD - ADD)))
    w_top = jnp.pad(params["clf_w"][:FEAT],
                    ((0, FEAT_PAD - FEAT), (0, CLS_PAD - CLS))).astype(jnp.bfloat16)
    w_bot = jnp.pad(params["clf_w"][FEAT:],
                    ((0, ADD_PAD - ADD), (0, CLS_PAD - CLS))).astype(jnp.bfloat16)
    clf_b = jnp.pad(params["clf_b"], ((0, 0), (0, CLS_PAD - CLS)))

    out_pad = ensemble_head(pooled, fc_w, fc_b, w_top, w_bot, clf_b,
                            feat_pad=FEAT_PAD, vmem_limit=vmem_limit)   # (B, CLS_PAD)
    return out_pad[:, :CLS]


# ---------------------------------------------------------------------------
# Pure-JAX f32 reference (same stand-in module semantics) and params.
# ---------------------------------------------------------------------------
def reference_forward(image, params):
    patches = im2col_3x3_same(image)

    def backbone(w, b):
        z = jnp.maximum(jnp.einsum("bpk,kn->bpn", patches, w) + b, 0.0)
        return jnp.mean(z, axis=1)

    x1 = backbone(params["cnn_conv_w"], params["cnn_conv_b"])
    f2 = backbone(params["in_conv_w"], params["in_conv_b"])
    x2 = f2 @ params["in_fc_w"] + params["in_fc_b"]
    x = jnp.concatenate([x1, x2], axis=1)
    return jnp.maximum(x, 0.0) @ params["clf_w"] + params["clf_b"]


def make_params(key, in_chans, feat_dim, add_data_dim, class_count):
    ks = jax.random.split(key, 8)
    scale = 0.05
    return {
        # backbone #1 ("cnn", frozen inception stand-in)
        "cnn_conv_w": scale * jax.random.normal(ks[0], (in_chans * 9, feat_dim), jnp.float32),
        "cnn_conv_b": scale * jax.random.normal(ks[1], (1, feat_dim), jnp.float32),
        # backbone #2 ("input_cnn", checkpointed inception stand-in)
        "in_conv_w": scale * jax.random.normal(ks[2], (in_chans * 9, feat_dim), jnp.float32),
        "in_conv_b": scale * jax.random.normal(ks[3], (1, feat_dim), jnp.float32),
        "in_fc_w": scale * jax.random.normal(ks[4], (feat_dim, add_data_dim), jnp.float32),
        "in_fc_b": scale * jax.random.normal(ks[5], (1, add_data_dim), jnp.float32),
        # ensemble classifier: Linear(feat_dim + add_data_dim, class_count)
        "clf_w": scale * jax.random.normal(ks[6], (feat_dim + add_data_dim, class_count), jnp.float32),
        "clf_b": scale * jax.random.normal(ks[7], (1, class_count), jnp.float32),
    }


if __name__ == "__main__":
    key = jax.random.PRNGKey(0)
    k_img, k_par = jax.random.split(key)

    B, C, H, W = 2, 3, 16, 16           # small synthetic image (NCHW)
    FEAT = 32                           # stand-in for inception fc.in_features (2048)
    ADD_DATA_DIM = 7                    # len(checkpoint['classes'])
    CLASS_COUNT = 5

    image = jax.random.normal(k_img, (B, C, H, W), jnp.float32)
    params = make_params(k_par, C, FEAT, ADD_DATA_DIM, CLASS_COUNT)

    out = jax.jit(ensemble_forward)(image, params)
    out = jax.block_until_ready(out)
    assert out.shape == (B, CLASS_COUNT), out.shape
    assert out.dtype == jnp.float32

    ref = reference_forward(image, params)
    err = float(jnp.max(jnp.abs(out - ref)))
    assert err < 2e-2, f"max abs err vs f32 reference: {err}"
    print("KERNEL_OK")
</pallas_src>

<mosaic_0001>
module attributes {stable_mosaic.version = 11 : i64} {
  func.func @_backbone_pool_kernel(%arg0: i32, %arg1: i32, %arg2: i32, %arg3: memref<1x256x32xbf16, #tpu.memory_space<vmem>>, %arg4: memref<32x256xbf16, #tpu.memory_space<vmem>>, %arg5: memref<1x1x256xf32, #tpu.memory_space<vmem>>, %arg6: memref<8x256xf32, #tpu.memory_space<vmem>>) attributes {dimension_semantics = [#tpu.dimension_semantics<parallel>, #tpu.dimension_semantics<parallel>, #tpu.dimension_semantics<arbitrary>], iteration_bounds = array<i64: 2, 1, 1>, scalar_prefetch = 0 : i64, scratch_operands = 1 : i64, tpu.core_type = #tpu.core_type<tc>, window_params = [{transform_indices = @transform_0, window_bounds = array<i64: 1, 256, 32>}, {pipeline_mode = #tpu.pipeline_mode<synchronous>, transform_indices = @transform_1, window_bounds = array<i64: 32, 256>}, {transform_indices = @transform_2, window_bounds = array<i64: 1, 1, 256>}]} {
    %c0_i32 = arith.constant 0 : i32
    %0 = arith.cmpi eq, %arg2, %c0_i32 : i32
    %1 = arith.extui %0 : i1 to i32
    %c0_i32_0 = arith.constant 0 : i32
    %2 = arith.cmpi ne, %1, %c0_i32_0 : i32
    scf.if %2 {
      %cst_13 = arith.constant 0.000000e+00 : f32
      %17 = vector.broadcast %cst_13 : f32 to vector<8x256xf32>
      %c0_14 = arith.constant 0 : index
      %c0_15 = arith.constant 0 : index
      %18 = vector.load %arg6[%c0_14, %c0_15] : memref<8x256xf32, #tpu.memory_space<vmem>>, vector<8x256xf32>
      tpu.vector_store %arg6[%c0_14, %c0_15], %17 {strides = array<i32>} : memref<8x256xf32, #tpu.memory_space<vmem>>, vector<8x256xf32>,
    } else {
    }
    %c0 = arith.constant 0 : index
    %c0_1 = arith.constant 0 : index
    %c0_2 = arith.constant 0 : index
    %3 = vector.load %arg3[%c0, %c0_1, %c0_2] : memref<1x256x32xbf16, #tpu.memory_space<vmem>>, vector<1x256x32xbf16>
    %4 = vector.shape_cast %3 : vector<1x256x32xbf16> to vector<256x32xbf16>
    %c0_3 = arith.constant 0 : index
    %c0_4 = arith.constant 0 : index
    %5 = vector.load %arg4[%c0_3, %c0_4] : memref<32x256xbf16, #tpu.memory_space<vmem>>, vector<32x256xbf16>
    %cst = arith.constant dense<0.000000e+00> : vector<256x256xf32>
    %6 = tpu.matmul %4, %5, %cst {dimension_numbers = #tpu.dot_dimension_numbers<[1], [0], [0], [1], [0, 0, 1, 1], [], []>} : vector<256x32xbf16>, vector<32x256xbf16>, vector<256x256xf32> -> vector<256x256xf32>
    %cst_5 = arith.constant 0.000000e+00 : f32
    %7 = vector.broadcast %cst_5 : f32 to vector<256x256xf32>
    %8 = arith.maximumf %6, %7 : vector<256x256xf32>
    %c0_6 = arith.constant 0 : index
    %c0_7 = arith.constant 0 : index
    %9 = vector.load %arg6[%c0_6, %c0_7] : memref<8x256xf32, #tpu.memory_space<vmem>>, vector<8x256xf32>
    %10 = vector.shape_cast %8 : vector<256x256xf32> to vector<32x8x256xf32>
    %cst_8 = arith.constant dense<0.000000e+00> : vector<8x256xf32>
    %11 = vector.multi_reduction <add>, %10, %cst_8 [0] : vector<32x8x256xf32> to vector<8x256xf32>
    %12 = arith.addf %9, %11 : vector<8x256xf32>
    %c0_9 = arith.constant 0 : index
    %c0_10 = arith.constant 0 : index
    %13 = vector.load %arg6[%c0_9, %c0_10] : memref<8x256xf32, #tpu.memory_space<vmem>>, vector<8x256xf32>
    tpu.vector_store %arg6[%c0_9, %c0_10], %12 {strides = array<i32>} : memref<8x256xf32, #tpu.memory_space<vmem>>, vector<8x256xf32>,
    %c0_i32_11 = arith.constant 0 : i32
    %14 = arith.cmpi eq, %arg2, %c0_i32_11 : i32
    %15 = arith.extui %14 : i1 to i32
    %c0_i32_12 = arith.constant 0 : i32
    %16 = arith.cmpi ne, %15, %c0_i32_12 : i32
    scf.if %16 {
      %c0_13 = arith.constant 0 : index
      %c0_14 = arith.constant 0 : index
      %17 = vector.load %arg6[%c0_13, %c0_14] : memref<8x256xf32, #tpu.memory_space<vmem>>, vector<8x256xf32>
      %cst_15 = arith.constant dense<0.000000e+00> : vector<256xf32>
      %18 = vector.multi_reduction <add>, %17, %cst_15 [0] : vector<8x256xf32> to vector<256xf32>
      %19 = vector.shape_cast %18 : vector<256xf32> to vector<1x256xf32>
      %cst_16 = arith.constant 3.906250e-03 : f32
      %20 = vector.broadcast %cst_16 : f32 to vector<1x256xf32>
      %21 = arith.mulf %19, %20 : vector<1x256xf32>
      %22 = vector.shape_cast %21 : vector<1x256xf32> to vector<1x1x256xf32>
      %c0_17 = arith.constant 0 : index
      %c0_18 = arith.constant 0 : index
      %c0_19 = arith.constant 0 : index
      %23 = vector.load %arg5[%c0_17, %c0_18, %c0_19] : memref<1x1x256xf32, #tpu.memory_space<vmem>>, vector<1x1x256xf32>
      tpu.vector_store %arg5[%c0_17, %c0_18, %c0_19], %22 {strides = array<i32>} : memref<1x1x256xf32, #tpu.memory_space<vmem>>, vector<1x1x256xf32>,
    } else {
    }
    return
  }
  func.func @transform_0(%arg0: i32, %arg1: i32, %arg2: i32) -> (i32, i32, i32) {
    %c0_i32 = arith.constant 0 : i32
    %c0_i32_0 = arith.constant 0 : i32
    return %arg0, %arg2, %c0_i32 : i32, i32, i32
  }
  func.func @transform_1(%arg0: i32, %arg1: i32, %arg2: i32) -> (i32, i32) {
    %c0_i32 = arith.constant 0 : i32
    %c0_i32_0 = arith.constant 0 : i32
    return %c0_i32, %arg1 : i32, i32
  }
  func.func @transform_2(%arg0: i32, %arg1: i32, %arg2: i32) -> (i32, i32, i32) {
    %c0_i32 = arith.constant 0 : i32
    %c0_i32_0 = arith.constant 0 : i32
    return %arg0, %c0_i32, %arg1 : i32, i32, i32
  }
}

module attributes {stable_mosaic.version = 11 : i64} {
  func.func @_ensemble_head_kernel(%arg0: memref<2x256xf32, #tpu.memory_space<vmem>>, %arg1: memref<128x128xbf16, #tpu.memory_space<vmem>>, %arg2: memref<1x128xf32, #tpu.memory_space<vmem>>, %arg3: memref<128x128xbf16, #tpu.memory_space<vmem>>, %arg4: memref<128x128xbf16, #tpu.memory_space<vmem>>, %arg5: memref<1x128xf32, #tpu.memory_space<vmem>>, %arg6: memref<2x128xf32, #tpu.memory_space<vmem>>) attributes {dimension_semantics = [], scalar_prefetch = 0 : i64, scratch_operands = 0 : i64, tpu.core_type = #tpu.core_type<tc>} {
    %c0 = arith.constant 0 : index
    %c0_0 = arith.constant 0 : index
    %0 = vector.load %arg0[%c0, %c0_0] : memref<2x256xf32, #tpu.memory_space<vmem>>, vector<2x256xf32>
    %1 = vector.extract_strided_slice %0 {offsets = [0, 0], sizes = [2, 128], strides = [1, 1]} : vector<2x256xf32> to vector<2x128xf32>
    %2 = vector.extract_strided_slice %0 {offsets = [0, 128], sizes = [2, 128], strides = [1, 1]} : vector<2x256xf32> to vector<2x128xf32>
    %3 = arith.truncf %2 : vector<2x128xf32> to vector<2x128xbf16>
    %c0_1 = arith.constant 0 : index
    %c0_2 = arith.constant 0 : index
    %4 = vector.load %arg1[%c0_1, %c0_2] : memref<128x128xbf16, #tpu.memory_space<vmem>>, vector<128x128xbf16>
    %cst = arith.constant dense<0.000000e+00> : vector<2x128xf32>
    %5 = tpu.matmul %3, %4, %cst {dimension_numbers = #tpu.dot_dimension_numbers<[1], [0], [0], [1], [0, 0, 1, 1], [], []>} : vector<2x128xbf16>, vector<128x128xbf16>, vector<2x128xf32> -> vector<2x128xf32>
    %c0_3 = arith.constant 0 : index
    %c0_4 = arith.constant 0 : index
    %6 = vector.load %arg2[%c0_3, %c0_4] : memref<1x128xf32, #tpu.memory_space<vmem>>, vector<1x128xf32>
    %7 = vector.broadcast %6 : vector<1x128xf32> to vector<2x128xf32>
    %8 = arith.addf %5, %7 : vector<2x128xf32>
    %cst_5 = arith.constant 0.000000e+00 : f32
    %9 = vector.broadcast %cst_5 : f32 to vector<2x128xf32>
    %10 = arith.maximumf %1, %9 : vector<2x128xf32>
    %11 = arith.truncf %10 : vector<2x128xf32> to vector<2x128xbf16>
    %cst_6 = arith.constant 0.000000e+00 : f32
    %12 = vector.broadcast %cst_6 : f32 to vector<2x128xf32>
    %13 = arith.maximumf %8, %12 : vector<2x128xf32>
    %14 = arith.truncf %13 : vector<2x128xf32> to vector<2x128xbf16>
    %c0_7 = arith.constant 0 : index
    %c0_8 = arith.constant 0 : index
    %15 = vector.load %arg3[%c0_7, %c0_8] : memref<128x128xbf16, #tpu.memory_space<vmem>>, vector<128x128xbf16>
    %cst_9 = arith.constant dense<0.000000e+00> : vector<2x128xf32>
    %16 = tpu.matmul %11, %15, %cst_9 {dimension_numbers = #tpu.dot_dimension_numbers<[1], [0], [0], [1], [0, 0, 1, 1], [], []>} : vector<2x128xbf16>, vector<128x128xbf16>, vector<2x128xf32> -> vector<2x128xf32>
    %c0_10 = arith.constant 0 : index
    %c0_11 = arith.constant 0 : index
    %17 = vector.load %arg4[%c0_10, %c0_11] : memref<128x128xbf16, #tpu.memory_space<vmem>>, vector<128x128xbf16>
    %cst_12 = arith.constant dense<0.000000e+00> : vector<2x128xf32>
    %18 = tpu.matmul %14, %17, %cst_12 {dimension_numbers = #tpu.dot_dimension_numbers<[1], [0], [0], [1], [0, 0, 1, 1], [], []>} : vector<2x128xbf16>, vector<128x128xbf16>, vector<2x128xf32> -> vector<2x128xf32>
    %19 = arith.addf %16, %18 : vector<2x128xf32>
    %c0_13 = arith.constant 0 : index
    %c0_14 = arith.constant 0 : index
    %20 = vector.load %arg5[%c0_13, %c0_14] : memref<1x128xf32, #tpu.memory_space<vmem>>, vector<1x128xf32>
    %21 = vector.broadcast %20 : vector<1x128xf32> to vector<2x128xf32>
    %22 = arith.addf %19, %21 : vector<2x128xf32>
    %c0_15 = arith.constant 0 : index
    %c0_16 = arith.constant 0 : index
    %23 = vector.load %arg6[%c0_15, %c0_16] : memref<2x128xf32, #tpu.memory_space<vmem>>, vector<2x128xf32>
    tpu.vector_store %arg6[%c0_15, %c0_16], %22 {strides = array<i32>} : memref<2x128xf32, #tpu.memory_space<vmem>>, vector<2x128xf32>,
    return
  }
}

</mosaic_0001>

<llo_original>
// kernel: ensemble_forward.2
$region0: #{ensemble_forward.2}
  #allocation0 [shape = 'u32[]', space=smem, size = 0x4, offset = 0x4, fixed_abs, tag = 'smem constant byte address 0x4 - core index']
  #allocation1 [shape = 'u32[144,128]{1,0:T(1,128)}', space=vmem, size = 0x12000, scoped, tag = 'internal scratch']
  #allocation2 [shape = 'f32[8,256]{1,0:T(8,128)}', space=vmem, size = 0x2000, scoped, tag = 'scratch operand']
  %s0 = inlined_call_operand.vmem [shape: bf16[2,256,32], index: 0, kind: input, shape index: {}]
  %s1 = inlined_call_operand.vmem [shape: bf16[32,256], index: 1, kind: input, shape index: {}]
  %s2 = inlined_call_operand.vmem [shape: f32[2,1,256], index: 2, kind: output, shape index: {}]
  %s3 = sld [smem:[#allocation0]]
  $region49: #{ensemble_forward.2} parent=0
    _
  %s5 = ssub.s32 1, %s3
  %s6 = scalar_select 0, %s5, %s3
  loop: start=0, step=1, limit=4
  $region2: #{ensemble_forward.2} parent=0 // loop_pre_header
    _
  $region3: #{ensemble_forward.2} parent=0 // loop_header
    %s8 = sphi 0, %s12
    %p9 = scmp.ge.s32.totalorder %s8, 4
    %s15 = sphi 0, %s34
    %s16 = sphi 0, %s30
    %s17 = sphi 0, %s26
    %s18 = sphi 0, %s15
    %s19 = sphi 0, %s16
    %s20 = sphi 0, %s17
    %s21 = sphi 0, %s18
    %s22 = sphi 0, %s19
    %s23 = sphi 0, %s20
    %s39 = sphi 0, %s41
    %s42 = sphi 0, %s39
    %s43 = sphi 0, %s42
    %s59 = sphi 0, %s43
    %s65 = sphi 0, %s67
    %s68 = sphi 0, %s65
    %s69 = sphi 0, %s68
    %s85 = sphi 0, %s69
    %s93 = sphi 0, %s95
    %s96 = sphi 0, %s93
    %s97 = sphi 0, %s96
    %s113 = sphi 0, %s97
  $region4: #{ensemble_forward.2} parent=0 // loop_header_branch
    %11 = sbr.rel (%p9) target = $region8
  $region5: #{ensemble_forward.2} parent=0 // loop_body
    %s13 = ssub.s32 %s8, 1
    %s14 = ssub.s32 %s8, 2
    %s24 = sadd.s32 1, %s17
    %p25 = scmp.ge.s32.totalorder %s24, 1
    %s26 = scalar_select %p25, 0, %s24
    %s27 = sadd.s32 1, %s16
    %s28 = scalar_select %p25, %s27, %s16
    %p29 = scmp.ge.s32.totalorder %s28, 1
    %s30 = scalar_select %p29, 0, %s28
    %s31 = sadd.s32 1, %s15
    %s32 = scalar_select %p29, %s31, %s15
    %p33 = scmp.ge.s32.totalorder %s32, 2
    %s34 = scalar_select %p33, 0, %s32
    %s35 = ssub.s32 %s15, %s34
    %s36 = ssub.s32 %s17, %s26
    %s37 = sor.u32 %s35, %s36
    %p38 = scmp.eq.s32.totalorder %s37, 0
    %s40 = sadd.s32 %s39, 1
    %s41 = scalar_select %p38, %s39, %s40
    %p44 = pneg %p38
    %p45 = scmp.eq.s32.totalorder %s8, 1
    %p46 = por %p44, %p45
    %p47 = scmp.ne.s32.totalorder %s39, %s42
    %p48 = scmp.eq.s32.totalorder %s8, 0
    %p49 = por %p47, %p48
    %p50 = scmp.ne.s32.totalorder %s39, %s42
    %p51 = scmp.eq.s32.totalorder %s13, 1
    %p52 = por %p50, %p51
    %p53 = scmp.ne.s32.totalorder %s42, %s43
    %p54 = scmp.eq.s32.totalorder %s13, 0
    %p55 = por %p53, %p54
    %p56 = scmp.ne.s32.totalorder %s42, %s43
    %p57 = scmp.eq.s32.totalorder %s14, 1
    %p58 = por %p56, %p57
    %p60 = scmp.ne.s32.totalorder %s43, %s59
    %p61 = scmp.eq.s32.totalorder %s14, 0
    %p62 = por %p60, %p61
    %s63 = ssub.s32 %s16, %s30
    %p64 = scmp.eq.s32.totalorder %s63, 0
    %s66 = sadd.s32 %s65, 1
    %s67 = scalar_select %p64, %s65, %s66
    %p70 = pneg %p64
    %p71 = scmp.eq.s32.totalorder %s8, 1
    %p72 = por %p70, %p71
    %p73 = scmp.ne.s32.totalorder %s65, %s68
    %p74 = scmp.eq.s32.totalorder %s8, 0
    %p75 = por %p73, %p74
    %p76 = scmp.ne.s32.totalorder %s65, %s68
    %p77 = scmp.eq.s32.totalorder %s13, 1
    %p78 = por %p76, %p77
    %p79 = scmp.ne.s32.totalorder %s68, %s69
    %p80 = scmp.eq.s32.totalorder %s13, 0
    %p81 = por %p79, %p80
    %p82 = scmp.ne.s32.totalorder %s68, %s69
    %p83 = scmp.eq.s32.totalorder %s14, 1
    %p84 = por %p82, %p83
    %p86 = scmp.ne.s32.totalorder %s69, %s85
    %p87 = scmp.eq.s32.totalorder %s14, 0
    %p88 = por %p86, %p87
    %s89 = ssub.s32 %s15, %s34
    %s90 = ssub.s32 %s16, %s30
    %s91 = sor.u32 %s89, %s90
    %p92 = scmp.eq.s32.totalorder %s91, 0
    %s94 = sadd.s32 %s93, 1
    %s95 = scalar_select %p92, %s93, %s94
    %p98 = pneg %p92
    %p99 = scmp.eq.s32.totalorder %s8, 1
    %p100 = por %p98, %p99
    %p101 = scmp.ne.s32.totalorder %s93, %s96
    %p102 = scmp.eq.s32.totalorder %s8, 0
    %p103 = por %p101, %p102
    %p104 = scmp.ne.s32.totalorder %s93, %s96
    %p105 = scmp.eq.s32.totalorder %s13, 1
    %p106 = por %p104, %p105
    %p107 = scmp.ne.s32.totalorder %s96, %s97
    %p108 = scmp.eq.s32.totalorder %s13, 0
    %p109 = por %p107, %p108
    %p110 = scmp.ne.s32.totalorder %s96, %s97
    %p111 = scmp.eq.s32.totalorder %s14, 1
    %p112 = por %p110, %p111
    %p114 = scmp.ne.s32.totalorder %s97, %s113
    %p115 = scmp.eq.s32.totalorder %s14, 0
    %p116 = por %p114, %p115
    %p117 = scmp.le.s32.totalorder 1, %s8
    %p118 = scmp.lt.s32.totalorder %s8, 3
    %p119 = pnand %p117, %p118
    %p120 = pneg %p119
    // Predicated region
    $region9: #{ensemble_forward.2} parent=5 // pred_check
      _
    $region10: #{ensemble_forward.2} parent=5 // pred_check_branch
      %122 = sbr.rel (%p119) target = $region12
    $region11: #{ensemble_forward.2} parent=5 // pred_region
      %s123 = ssub.s32 %s8, 1
      // Predicated region
      $region13: #{ensemble_forward.2} parent=11 // pred_check
        %p124 = pneg %p81
      $region14: #{ensemble_forward.2} parent=11 // pred_check_branch
        %126 = sbr.rel (%p124) target = $region16
      $region15: #{ensemble_forward.2} parent=11 // pred_region
        %s127 = smul.u32 2, %s19
        %p128 = scmp.lt.s32.totalorder %s127, 1
        %s129 = scalar_select %p128, %s127, 1
        %s130 = smul.addr %s129, 4
        %s131 = scalar_lea.vmem %s1, %s130
        %s132 = smul.u32 2, %s19
      $region16: #{ensemble_forward.2} parent=11 // pred_fallthru
        _
    $region12: #{ensemble_forward.2} parent=5 // pred_fallthru
      _
    %p133 = scmp.lt.s32.totalorder %s8, 2
    // Predicated region
    $region17: #{ensemble_forward.2} parent=5 // pred_check
      %p134 = pneg %p133
    $region18: #{ensemble_forward.2} parent=5 // pred_check_branch
      %136 = sbr.rel (%p134) target = $region20
    $region19: #{ensemble_forward.2} parent=5 // pred_region
      // Predicated region
      $region21: #{ensemble_forward.2} parent=19 // pred_check
        %p137 = pneg %p49
      $region22: #{ensemble_forward.2} parent=19 // pred_check_branch
        %139 = sbr.rel (%p137) target = $region24
      $region23: #{ensemble_forward.2} parent=19 // pred_region
        %s140 = smul.u32 32, %s17
        %p141 = scmp.lt.s32.totalorder %s15, 1
        %s142 = scalar_select %p141, %s15, 1
        %p143 = scmp.lt.s32.totalorder %s140, 31
        %s144 = scalar_select %p143, %s140, 31
        %s145 = smul.addr %s142, 32
        %s146 = sadd.s32 %s144, %s145
        %s147 = smul.addr %s146, 4
        %s148 = scalar_lea.vmem %s0, %s147
        %s149 = smul.u32 32, %s17
      $region24: #{ensemble_forward.2} parent=19 // pred_fallthru
        _
    $region20: #{ensemble_forward.2} parent=5 // pred_fallthru
      _
    %p150 = scmp.le.s32.totalorder 1, %s8
    %p151 = scmp.lt.s32.totalorder %s8, 3
    %p152 = pnand %p150, %p151
    %p153 = pneg %p152
    // Predicated region
    $region25: #{ensemble_forward.2} parent=5 // pred_check
      _
    $region26: #{ensemble_forward.2} parent=5 // pred_check_branch
      %155 = sbr.rel (%p152) target = $region28
    $region27: #{ensemble_forward.2} parent=5 // pred_region
      %s156 = ssub.s32 %s8, 1
      %s157 = smul.u32 32, %s20
      %p158 = scmp.lt.s32.totalorder %s18, 1
      %s159 = scalar_select %p158, %s18, 1
      %p160 = scmp.lt.s32.totalorder %s157, 31
      %s161 = scalar_select %p160, %s157, 31
      %s162 = smul.addr %s159, 32
      %s163 = sadd.s32 %s161, %s162
      %s164 = smul.addr %s163, 4
      %s165 = scalar_lea.vmem %s0, %s164
      %p166 = pneg %p55
      %p167 = pneg %p52
      %s168 = smul.u32 2, %s19
      %p169 = scmp.lt.s32.totalorder %s168, 1
      %s170 = scalar_select %p169, %s168, 1
      %s171 = smul.addr %s170, 4
      %s172 = scalar_lea.vmem %s1, %s171
      %p173 = pneg %p81
      %p174 = pneg %p78
      %p175 = pneg %p109
      %p176 = pneg %p106
      %s177 = smul.u32 2, %s19
      %p178 = scmp.lt.s32.totalorder %s18, 1
      %s179 = scalar_select %p178, %s18, 1
      %p180 = scmp.lt.s32.totalorder %s177, 1
      %s181 = scalar_select %p180, %s177, 1
      %s182 = smul.addr %s179, 2
      %s183 = sadd.s32 %s181, %s182
      %s184 = scalar_lea.vmem %s2, %s183
      %s185 = smul.u32 32, %s20
      %p186 = scmp.lt.s32.totalorder %s18, 1
      %s187 = scalar_select %p186, %s18, 1
      %p188 = scmp.lt.s32.totalorder %s185, 31
      %s189 = scalar_select %p188, %s185, 31
      %s190 = smul.addr %s187, 32
      %s191 = sadd.s32 %s189, %s190
      %s192 = smul.addr %s191, 4
      %s193 = scalar_lea.vmem %s0, %s192
      %s194 = smul.u32 32, %s20
      %s195 = smul.u32 2, %s19
      %p196 = scmp.lt.s32.totalorder %s195, 1
      %s197 = scalar_select %p196, %s195, 1
      %s198 = smul.addr %s197, 4
      %s199 = scalar_lea.vmem %s1, %s198
      %s200 = smul.u32 2, %s19
      %s201 = smul.u32 2, %s19
      %p202 = scmp.lt.s32.totalorder %s18, 1
      %s203 = scalar_select %p202, %s18, 1
      %p204 = scmp.lt.s32.totalorder %s201, 1
      %s205 = scalar_select %p204, %s201, 1
      %s206 = smul.addr %s203, 2
      %s207 = sadd.s32 %s205, %s206
      %s208 = scalar_lea.vmem %s2, %s207
      %s209 = smul.u32 2, %s19
      %p211 = scmp.eq.s32.totalorder %s20, 0
      // Predicated region
      $region29: #{ensemble_forward.2} parent=27 // pred_check
        %p212 = pneg %p211
      $region30: #{ensemble_forward.2} parent=27 // pred_check_branch
        %214 = sbr.rel (%p212) target = $region32
      $region31: #{ensemble_forward.2} parent=27 // pred_region
        %215 = vst [vmem:[#allocation2] sm:$0xff] 0.0
        %216 = vst [vmem:[#allocation2 + $0x8] sm:$0xff] 0.0
      $region32: #{ensemble_forward.2} parent=27 // pred_fallthru
        _
      %v217 = vld [vmem:[%s193] sm:$0xf]
      %v218 = vld [vmem:[%s193 + $0x4] sm:$0xf]
      %v219 = vld [vmem:[%s193 + $0x8] sm:$0xf]
      %v220 = vld [vmem:[%s193 + $0xc] sm:$0xf]
      %v221 = vld [vmem:[%s193 + $0x10] sm:$0xf]
      %v222 = vld [vmem:[%s193 + $0x14] sm:$0xf]
      %v223 = vld [vmem:[%s193 + $0x18] sm:$0xf]
      %v224 = vld [vmem:[%s193 + $0x1c] sm:$0xf]
      %v225 = vld [vmem:[%s193 + $0x20] sm:$0xf]
      %v226 = vld [vmem:[%s193 + $0x24] sm:$0xf]
      %v227 = vld [vmem:[%s193 + $0x28] sm:$0xf]
      %v228 = vld [vmem:[%s193 + $0x2c] sm:$0xf]
      %v229 = vld [vmem:[%s193 + $0x30] sm:$0xf]
      %v230 = vld [vmem:[%s193 + $0x34] sm:$0xf]
      %v231 = vld [vmem:[%s193 + $0x38] sm:$0xf]
      %v232 = vld [vmem:[%s193 + $0x3c] sm:$0xf]
      %v233 = vld [vmem:[%s193 + $0x40] sm:$0xf]
      %v234 = vld [vmem:[%s193 + $0x44] sm:$0xf]
      %v235 = vld [vmem:[%s193 + $0x48] sm:$0xf]
      %v236 = vld [vmem:[%s193 + $0x4c] sm:$0xf]
      %v237 = vld [vmem:[%s193 + $0x50] sm:$0xf]
      %v238 = vld [vmem:[%s193 + $0x54] sm:$0xf]
      %v239 = vld [vmem:[%s193 + $0x58] sm:$0xf]
      %v240 = vld [vmem:[%s193 + $0x5c] sm:$0xf]
      %v241 = vld [vmem:[%s193 + $0x60] sm:$0xf]
      %v242 = vld [vmem:[%s193 + $0x64] sm:$0xf]
      %v243 = vld [vmem:[%s193 + $0x68] sm:$0xf]
      %v244 = vld [vmem:[%s193 + $0x6c] sm:$0xf]
      %v245 = vld [vmem:[%s193 + $0x70] sm:$0xf]
      %v246 = vld [vmem:[%s193 + $0x74] sm:$0xf]
      %v247 = vld [vmem:[%s193 + $0x78] sm:$0xf]
      %v248 = vld [vmem:[%s193 + $0x7c] sm:$0xf]
      %v249 = vld [vmem:[%s199] sm:$0xff]
      %v250 = vld [vmem:[%s199 + $0x8] sm:$0xff]
      %v251 = vld [vmem:[%s199 + $0x10] sm:$0xff]
      %v252 = vld [vmem:[%s199 + $0x18] sm:$0xff]
      %v285 = vunpack.c.l.b16 %v217
      %v286 = vunpack.c.l.b16 %v218
      %v287 = vunpack.c.l.b16 %v219
      %v288 = vunpack.c.l.b16 %v220
      %v289 = vunpack.c.l.b16 %v221
      %v290 = vunpack.c.l.b16 %v222
      %v291 = vunpack.c.l.b16 %v223
      %v292 = vunpack.c.l.b16 %v224
      %v293 = vunpack.c.l.b16 %v225
      %v294 = vunpack.c.l.b16 %v226
      %v295 = vunpack.c.l.b16 %v227
      %v296 = vunpack.c.l.b16 %v228
      %v297 = vunpack.c.l.b16 %v229
      %v298 = vunpack.c.l.b16 %v230
      %v299 = vunpack.c.l.b16 %v231
      %v300 = vunpack.c.l.b16 %v232
      %v301 = vunpack.c.l.b16 %v233
      %v302 = vunpack.c.l.b16 %v234
      %v303 = vunpack.c.l.b16 %v235
      %v304 = vunpack.c.l.b16 %v236
      %v305 = vunpack.c.l.b16 %v237
      %v306 = vunpack.c.l.b16 %v238
      %v307 = vunpack.c.l.b16 %v239
      %v308 = vunpack.c.l.b16 %v240
      %v309 = vunpack.c.l.b16 %v241
      %v310 = vunpack.c.l.b16 %v242
      %v311 = vunpack.c.l.b16 %v243
      %v312 = vunpack.c.l.b16 %v244
      %v313 = vunpack.c.l.b16 %v245
      %v314 = vunpack.c.l.b16 %v246
      %v315 = vunpack.c.l.b16 %v247
      %v316 = vunpack.c.l.b16 %v248
      %v317 = vpack.c.b16 %v286, %v285
      %v318 = vpack.c.b16 %v288, %v287
      %v319 = vpack.c.b16 %v290, %v289
      %v320 = vpack.c.b16 %v292, %v291
      %v321 = vpack.c.b16 %v294, %v293
      %v322 = vpack.c.b16 %v296, %v295
      %v323 = vpack.c.b16 %v298, %v297
      %v324 = vpack.c.b16 %v300, %v299
      %v325 = vpack.c.b16 %v302, %v301
      %v326 = vpack.c.b16 %v304, %v303
      %v327 = vpack.c.b16 %v306, %v305
      %v328 = vpack.c.b16 %v308, %v307
      %v329 = vpack.c.b16 %v310, %v309
      %v330 = vpack.c.b16 %v312, %v311
      %v331 = vpack.c.b16 %v314, %v313
      %v332 = vpack.c.b16 %v316, %v315
      %v337 = vunpack.c.l.b16 %v249
      %v338 = vunpack.c.h.b16 %v249
      %v339 = vunpack.c.l.b16 %v250
      %v340 = vunpack.c.h.b16 %v250
      %v341 = vunpack.c.l.b16 %v251
      %v342 = vunpack.c.h.b16 %v251
      %v343 = vunpack.c.l.b16 %v252
      %v344 = vunpack.c.h.b16 %v252
      %v345 = vpack.c.b16 %v339, %v337
      %v346 = vpack.c.b16 %v340, %v338
      %v347 = vpack.c.b16 %v343, %v341
      %v348 = vpack.c.b16 %v344, %v342
      %vm353 = vcmask 261120
      %v355 = vsel %vm353, %v317, 0
      %v358 = vsel %vm353, %v318, 0
      %v361 = vsel %vm353, %v319, 0
      %v364 = vsel %vm353, %v320, 0
      %v367 = vsel %vm353, %v321, 0
      %v370 = vsel %vm353, %v322, 0
      %v373 = vsel %vm353, %v323, 0
      %v376 = vsel %vm353, %v324, 0
      %v379 = vsel %vm353, %v325, 0
      %v382 = vsel %vm353, %v326, 0
      %v385 = vsel %vm353, %v327, 0
      %v388 = vsel %vm353, %v328, 0
      %v391 = vsel %vm353, %v329, 0
      %v394 = vsel %vm353, %v330, 0
      %v397 = vsel %vm353, %v331, 0
      %v400 = vsel %vm353, %v332, 0
      %402 = vmatprep.subr.bf16.mxu0 0
      %403 = vmatpush1.bf16.msra.mxu0 0
      %404 = vmatprep.subr.bf16.mxu0 0
      %405 = vmatpush1.bf16.msra.mxu0 0
      %406 = vmatprep.subr.bf16.mxu0 0
      %407 = vmatpush1.bf16.msra.mxu0 0
      %408 = vmatprep.subr.bf16.mxu0 0
      %409 = vmatpush1.bf16.msra.mxu0 0
      %410 = vmatprep.subr.bf16.mxu0 0
      %411 = vmatpush1.bf16.msra.mxu0 0
      %412 = vmatprep.subr.bf16.mxu0 0
      %413 = vmatpush1.bf16.msra.mxu0 0
      %414 = vmatprep.subr.bf16.mxu0 %v348
      %415 = vmatpush1.bf16.msra.mxu0 %v347
      %416 = vmatprep.subr.bf16.mxu0 %v346
      %417 = vmatpush1.bf16.msra.mxu0 %v345
      %418 = vmatprep.subr.bf16.mxu0 0
      %419 = vmatpush2.bf16.msra.mxu0 0
      %420 = vmatprep.subr.bf16.mxu0 0
      %421 = vmatpush2.bf16.msra.mxu0 0
      %422 = vmatprep.subr.bf16.mxu0 0
      %423 = vmatpush2.bf16.msra.mxu0 0
      %424 = vmatprep.subr.bf16.mxu0 0
      %425 = vmatpush2.bf16.msra.mxu0 0
      %426 = vmatprep.subr.bf16.mxu0 0
      %427 = vmatpush2.bf16.msra.mxu0 0
      %428 = vmatprep.subr.bf16.mxu0 0
      %429 = vmatpush2.bf16.msra.mxu0 0
      %430 = vmatprep.subr.bf16.mxu0 0
      %431 = vmatpush2.bf16.msra.mxu0 0
      %432 = vmatprep.subr.bf16.mxu0 0
      %433 = vmatpush2.bf16.msra.mxu0 0
      %434 = vmatprep.mubr.bf16.mxu0 0
      %435 = vmatmul.mubr.bf16.gmra.mxu0 %v355
      %v436 = vpop.f32.mrf.mxu0
      %v437 = vadd.f32 0.0, %v436
      %v438 = vpop.f32.mrf.mxu0
      %v439 = vadd.f32 0.0, %v438
      %v440 = vpop.f32.mrf.mxu0
      %v441 = vadd.f32 0.0, %v440
      %v442 = vpop.f32.mrf.mxu0
      %v443 = vadd.f32 0.0, %v442
      %444 = vmatprep.mubr.bf16.mxu0 0
      %445 = vmatmul.mubr.bf16.gmra.mxu0 %v358
      %v446 = vpop.f32.mrf.mxu0
      %v447 = vadd.f32 0.0, %v446
      %v448 = vpop.f32.mrf.mxu0
      %v449 = vadd.f32 0.0, %v448
      %v450 = vpop.f32.mrf.mxu0
      %v451 = vadd.f32 0.0, %v450
      %v452 = vpop.f32.mrf.mxu0
      %v453 = vadd.f32 0.0, %v452
      %454 = vmatprep.mubr.bf16.mxu0 0
      %455 = vmatmul.mubr.bf16.gmra.mxu0 %v361
      %v456 = vpop.f32.mrf.mxu0
      %v457 = vadd.f32 0.0, %v456
      %v458 = vpop.f32.mrf.mxu0
      %v459 = vadd.f32 0.0, %v458
      %v460 = vpop.f32.mrf.mxu0
      %v461 = vadd.f32 0.0, %v460
      %v462 = vpop.f32.mrf.mxu0
      %v463 = vadd.f32 0.0, %v462
      %464 = vmatprep.mubr.bf16.mxu0 0
      %465 = vmatmul.mubr.bf16.gmra.mxu0 %v364
      %v466 = vpop.f32.mrf.mxu0
      %v467 = vadd.f32 0.0, %v466
      %v468 = vpop.f32.mrf.mxu0
      %v469 = vadd.f32 0.0, %v468
      %v470 = vpop.f32.mrf.mxu0
      %v471 = vadd.f32 0.0, %v470
      %v472 = vpop.f32.mrf.mxu0
      %v473 = vadd.f32 0.0, %v472
      %474 = vmatprep.mubr.bf16.mxu0 0
      %475 = vmatmul.mubr.bf16.gmra.mxu0 %v367
      %v476 = vpop.f32.mrf.mxu0
      %v477 = vadd.f32 0.0, %v476
      %v478 = vpop.f32.mrf.mxu0
      %v479 = vadd.f32 0.0, %v478
      %v480 = vpop.f32.mrf.mxu0
      %v481 = vadd.f32 0.0, %v480
      %v482 = vpop.f32.mrf.mxu0
      %v483 = vadd.f32 0.0, %v482
      %484 = vmatprep.mubr.bf16.mxu0 0
      %485 = vmatmul.mubr.bf16.gmra.mxu0 %v370
      %v486 = vpop.f32.mrf.mxu0
      %v487 = vadd.f32 0.0, %v486
      %v488 = vpop.f32.mrf.mxu0
      %v489 = vadd.f32 0.0, %v488
      %v490 = vpop.f32.mrf.mxu0
      %v491 = vadd.f32 0.0, %v490
      %v492 = vpop.f32.mrf.mxu0
      %v493 = vadd.f32 0.0, %v492
      %494 = vmatprep.mubr.bf16.mxu0 0
      %495 = vmatmul.mubr.bf16.gmra.mxu0 %v373
      %v496 = vpop.f32.mrf.mxu0
      %v497 = vadd.f32 0.0, %v496
      %v498 = vpop.f32.mrf.mxu0
      %v499 = vadd.f32 0.0, %v498
      %v500 = vpop.f32.mrf.mxu0
      %v501 = vadd.f32 0.0, %v500
      %v502 = vpop.f32.mrf.mxu0
      %v503 = vadd.f32 0.0, %v502
      %504 = vmatprep.mubr.bf16.mxu0 0
      %505 = vmatmul.mubr.bf16.gmra.mxu0 %v376
      %v506 = vpop.f32.mrf.mxu0
      %v507 = vadd.f32 0.0, %v506
      %v508 = vpop.f32.mrf.mxu0
      %v509 = vadd.f32 0.0, %v508
      %v510 = vpop.f32.mrf.mxu0
      %v511 = vadd.f32 0.0, %v510
      %v512 = vpop.f32.mrf.mxu0
      %v513 = vadd.f32 0.0, %v512
      %514 = vmatprep.mubr.bf16.mxu0 0
      %515 = vmatmul.mubr.bf16.gmra.mxu0 %v379
      %v516 = vpop.f32.mrf.mxu0
      %v517 = vadd.f32 0.0, %v516
      %v518 = vpop.f32.mrf.mxu0
      %v519 = vadd.f32 0.0, %v518
      %v520 = vpop.f32.mrf.mxu0
      %v521 = vadd.f32 0.0, %v520
      %v522 = vpop.f32.mrf.mxu0
      %v523 = vadd.f32 0.0, %v522
      %524 = vmatprep.mubr.bf16.mxu0 0
      %525 = vmatmul.mubr.bf16.gmra.mxu0 %v382
      %v526 = vpop.f32.mrf.mxu0
      %v527 = vadd.f32 0.0, %v526
      %v528 = vpop.f32.mrf.mxu0
      %v529 = vadd.f32 0.0, %v528
      %v530 = vpop.f32.mrf.mxu0
      %v531 = vadd.f32 0.0, %v530
      %v532 = vpop.f32.mrf.mxu0
      %v533 = vadd.f32 0.0, %v532
      %534 = vmatprep.mubr.bf16.mxu0 0
      %535 = vmatmul.mubr.bf16.gmra.mxu0 %v385
      %v536 = vpop.f32.mrf.mxu0
      %v537 = vadd.f32 0.0, %v536
      %v538 = vpop.f32.mrf.mxu0
      %v539 = vadd.f32 0.0, %v538
      %v540 = vpop.f32.mrf.mxu0
      %v541 = vadd.f32 0.0, %v540
      %v542 = vpop.f32.mrf.mxu0
      %v543 = vadd.f32 0.0, %v542
      %544 = vmatprep.mubr.bf16.mxu0 0
      %545 = vmatmul.mubr.bf16.gmra.mxu0 %v388
      %v546 = vpop.f32.mrf.mxu0
      %v547 = vadd.f32 0.0, %v546
      %v548 = vpop.f32.mrf.mxu0
      %v549 = vadd.f32 0.0, %v548
      %v550 = vpop.f32.mrf.mxu0
      %v551 = vadd.f32 0.0, %v550
      %v552 = vpop.f32.mrf.mxu0
      %v553 = vadd.f32 0.0, %v552
      %554 = vmatprep.mubr.bf16.mxu0 0
      %555 = vmatmul.mubr.bf16.gmra.mxu0 %v391
      %v556 = vpop.f32.mrf.mxu0
      %v557 = vadd.f32 0.0, %v556
      %v558 = vpop.f32.mrf.mxu0
      %v559 = vadd.f32 0.0, %v558
      %v560 = vpop.f32.mrf.mxu0
      %v561 = vadd.f32 0.0, %v560
      %v562 = vpop.f32.mrf.mxu0
      %v563 = vadd.f32 0.0, %v562
      %564 = vmatprep.mubr.bf16.mxu0 0
      %565 = vmatmul.mubr.bf16.gmra.mxu0 %v394
      %v566 = vpop.f32.mrf.mxu0
      %v567 = vadd.f32 0.0, %v566
      %v568 = vpop.f32.mrf.mxu0
      %v569 = vadd.f32 0.0, %v568
      %v570 = vpop.f32.mrf.mxu0
      %v571 = vadd.f32 0.0, %v570
      %v572 = vpop.f32.mrf.mxu0
      %v573 = vadd.f32 0.0, %v572
      %574 = vmatprep.mubr.bf16.mxu0 0
      %575 = vmatmul.mubr.bf16.gmra.mxu0 %v397
      %v576 = vpop.f32.mrf.mxu0
      %v577 = vadd.f32 0.0, %v576
      %v578 = vpop.f32.mrf.mxu0
      %v579 = vadd.f32 0.0, %v578
      %v580 = vpop.f32.mrf.mxu0
      %v581 = vadd.f32 0.0, %v580
      %v582 = vpop.f32.mrf.mxu0
      %v583 = vadd.f32 0.0, %v582
      %584 = vmatprep.mubr.bf16.mxu0 0
      %585 = vmatmul.mubr.bf16.gmra.mxu0 %v400
      %v586 = vpop.f32.mrf.mxu0
      %v587 = vadd.f32 0.0, %v586
      %v588 = vpop.f32.mrf.mxu0
      %v589 = vadd.f32 0.0, %v588
      %v590 = vpop.f32.mrf.mxu0
      %v591 = vadd.f32 0.0, %v590
      %v592 = vpop.f32.mrf.mxu0
      %v593 = vadd.f32 0.0, %v592
      %594 = vdwg.mxu0
      %v595 = vmax.f32 %v437, 0.0
      %v596 = vmax.f32 %v439, 0.0
      %v597 = vmax.f32 %v441, 0.0
      %v598 = vmax.f32 %v443, 0.0
      %v599 = vmax.f32 %v447, 0.0
      %v600 = vmax.f32 %v449, 0.0
      %v601 = vmax.f32 %v451, 0.0
      %v602 = vmax.f32 %v453, 0.0
      %v603 = vmax.f32 %v457, 0.0
      %v604 = vmax.f32 %v459, 0.0
      %v605 = vmax.f32 %v461, 0.0
      %v606 = vmax.f32 %v463, 0.0
      %v607 = vmax.f32 %v467, 0.0
      %v608 = vmax.f32 %v469, 0.0
      %v609 = vmax.f32 %v471, 0.0
      %v610 = vmax.f32 %v473, 0.0
      %v611 = vmax.f32 %v477, 0.0
      %v612 = vmax.f32 %v479, 0.0
      %v613 = vmax.f32 %v481, 0.0
      %v614 = vmax.f32 %v483, 0.0
      %v615 = vmax.f32 %v487, 0.0
      %v616 = vmax.f32 %v489, 0.0
      %v617 = vmax.f32 %v491, 0.0
      %v618 = vmax.f32 %v493, 0.0
      %v619 = vmax.f32 %v497, 0.0
      %v620 = vmax.f32 %v499, 0.0
      %v621 = vmax.f32 %v501, 0.0
      %v622 = vmax.f32 %v503, 0.0
      %v623 = vmax.f32 %v507, 0.0
      %v624 = vmax.f32 %v509, 0.0
      %v625 = vmax.f32 %v511, 0.0
      %v626 = vmax.f32 %v513, 0.0
      %v627 = vmax.f32 %v517, 0.0
      %v628 = vmax.f32 %v519, 0.0
      %v629 = vmax.f32 %v521, 0.0
      %v630 = vmax.f32 %v523, 0.0
      %v631 = vmax.f32 %v527, 0.0
      %v632 = vmax.f32 %v529, 0.0
      %v633 = vmax.f32 %v531, 0.0
      %v634 = vmax.f32 %v533, 0.0
      %v635 = vmax.f32 %v537, 0.0
      %v636 = vmax.f32 %v539, 0.0
      %v637 = vmax.f32 %v541, 0.0
      %v638 = vmax.f32 %v543, 0.0
      %v639 = vmax.f32 %v547, 0.0
      %v640 = vmax.f32 %v549, 0.0
      %v641 = vmax.f32 %v551, 0.0
      %v642 = vmax.f32 %v553, 0.0
      %v643 = vmax.f32 %v557, 0.0
      %v644 = vmax.f32 %v559, 0.0
      %v645 = vmax.f32 %v561, 0.0
      %v646 = vmax.f32 %v563, 0.0
      %v647 = vmax.f32 %v567, 0.0
      %v648 = vmax.f32 %v569, 0.0
      %v649 = vmax.f32 %v571, 0.0
      %v650 = vmax.f32 %v573, 0.0
      %v651 = vmax.f32 %v577, 0.0
      %v652 = vmax.f32 %v579, 0.0
      %v653 = vmax.f32 %v581, 0.0
      %v654 = vmax.f32 %v583, 0.0
      %v655 = vmax.f32 %v587, 0.0
      %v656 = vmax.f32 %v589, 0.0
      %v657 = vmax.f32 %v591, 0.0
      %v658 = vmax.f32 %v593, 0.0
      %v659 = vld [vmem:[#allocation2] sm:$0xff]
      %v660 = vld [vmem:[#allocation2 + $0x8] sm:$0xff]
      %v661 = vadd.f32 %v595, %v597
      %v662 = vadd.f32 %v661, %v599
      %v663 = vadd.f32 %v662, %v601
      %v664 = vadd.f32 %v663, %v603
      %v665 = vadd.f32 %v664, %v605
      %v666 = vadd.f32 %v665, %v607
      %v667 = vadd.f32 %v666, %v609
      %v668 = vadd.f32 %v667, %v611
      %v669 = vadd.f32 %v668, %v613
      %v670 = vadd.f32 %v669, %v615
      %v671 = vadd.f32 %v670, %v617
      %v672 = vadd.f32 %v671, %v619
      %v673 = vadd.f32 %v672, %v621
      %v674 = vadd.f32 %v673, %v623
      %v675 = vadd.f32 %v674, %v625
      %v676 = vadd.f32 %v675, %v627
      %v677 = vadd.f32 %v676, %v629
      %v678 = vadd.f32 %v677, %v631
      %v679 = vadd.f32 %v678, %v633
      %v680 = vadd.f32 %v679, %v635
      %v681 = vadd.f32 %v680, %v637
      %v682 = vadd.f32 %v681, %v639
      %v683 = vadd.f32 %v682, %v641
      %v684 = vadd.f32 %v683, %v643
      %v685 = vadd.f32 %v684, %v645
      %v686 = vadd.f32 %v685, %v647
      %v687 = vadd.f32 %v686, %v649
      %v688 = vadd.f32 %v687, %v651
      %v689 = vadd.f32 %v688, %v653
      %v690 = vadd.f32 %v689, %v655
      %v691 = vadd.f32 %v690, %v657
      %v692 = vadd.f32 %v596, %v598
      %v693 = vadd.f32 %v692, %v600
      %v694 = vadd.f32 %v693, %v602
      %v695 = vadd.f32 %v694, %v604
      %v696 = vadd.f32 %v695, %v606
      %v697 = vadd.f32 %v696, %v608
      %v698 = vadd.f32 %v697, %v610
      %v699 = vadd.f32 %v698, %v612
      %v700 = vadd.f32 %v699, %v614
      %v701 = vadd.f32 %v700, %v616
      %v702 = vadd.f32 %v701, %v618
      %v703 = vadd.f32 %v702, %v620
      %v704 = vadd.f32 %v703, %v622
      %v705 = vadd.f32 %v704, %v624
      %v706 = vadd.f32 %v705, %v626
      %v707 = vadd.f32 %v706, %v628
      %v708 = vadd.f32 %v707, %v630
      %v709 = vadd.f32 %v708, %v632
      %v710 = vadd.f32 %v709, %v634
      %v711 = vadd.f32 %v710, %v636
      %v712 = vadd.f32 %v711, %v638
      %v713 = vadd.f32 %v712, %v640
      %v714 = vadd.f32 %v713, %v642
      %v715 = vadd.f32 %v714, %v644
      %v716 = vadd.f32 %v715, %v646
      %v717 = vadd.f32 %v716, %v648
      %v718 = vadd.f32 %v717, %v650
      %v719 = vadd.f32 %v718, %v652
      %v720 = vadd.f32 %v719, %v654
      %v721 = vadd.f32 %v720, %v656
      %v722 = vadd.f32 %v721, %v658
      %v723 = vadd.f32 %v659, %v691
      %v724 = vadd.f32 %v660, %v722
      %725 = vst [vmem:[#allocation2] sm:$0xff] %v723
      %726 = vst [vmem:[#allocation2 + $0x8] sm:$0xff] %v724
      // Predicated region
      $region33: #{ensemble_forward.2} parent=27 // pred_check
        %p727 = pneg %p211
      $region34: #{ensemble_forward.2} parent=27 // pred_check_branch
        %729 = sbr.rel (%p727) target = $region36
      $region35: #{ensemble_forward.2} parent=27 // pred_region
        %v730 = vld [vmem:[#allocation2] sm:$0xff]
        %v731 = vld [vmem:[#allocation2 + $0x8] sm:$0xff]
        %v732 = vrot.slane %v730, 4
        %v733 = vadd.f32 %v730, %v732
        %v734 = vrot.slane %v733, 2
        %v735 = vadd.f32 %v733, %v734
        %v736 = vrot.slane %v735, 1
        %v737 = vadd.f32 %v735, %v736
        %v738 = vrot.slane %v731, 4
        %v739 = vadd.f32 %v731, %v738
        %v740 = vrot.slane %v739, 2
        %v741 = vadd.f32 %v739, %v740
        %v742 = vrot.slane %v741, 1
        %v743 = vadd.f32 %v741, %v742
        %v744 = vmul.f32 %v737, 0.00390625
        %v745 = vmul.f32 %v743, 0.00390625
        %v748 = vcombine.low %v744, %v745
        %v750 = vunpack.c.l.s4 1966171168
        %v751 = vunpack.c.0.s8 %v750
        %v752 = vlaneseq
        %v753 = vshrl.u32 %v752, 7
        %v754 = vsub.s32 %v751, %v753
        %v755 = vrot.slane %v748, %v754
        %v757 = vunpack.c.l.s4 1966171168
        %v758 = vunpack.c.0.s8 %v757
        %v759 = vlaneseq
        %v760 = vshrl.u32 %v759, 7
        %v761 = vsub.s32 %v758, %v760
        %v762 = vrot.slane %v755, %v761
        %v764 = vlaneseq
        %vm765 = vcmp.ge.s32.totalorder %v764, 0
        %vm766 = vcmp.lt.s32.totalorder %v764, 256
        %vm767 = vmand %vm765, %vm766
        %768 = vst.msk [vmem:[%s208] sm:$0x3] %vm767, %v762
      $region36: #{ensemble_forward.2} parent=27 // pred_fallthru
        _
      %s769 = smul.u32 2, %s19
      %p770 = scmp.lt.s32.totalorder %s18, 1
      %s771 = scalar_select %p770, %s18, 1
      %p772 = scmp.lt.s32.totalorder %s769, 1
      %s773 = scalar_select %p772, %s769, 1
      %s774 = smul.addr %s771, 2
      %s775 = sadd.s32 %s773, %s774
      %s776 = scalar_lea.vmem %s2, %s775
      // Predicated region
      $region37: #{ensemble_forward.2} parent=27 // pred_check
        %p777 = pneg %p106
      $region38: #{ensemble_forward.2} parent=27 // pred_check_branch
        %779 = sbr.rel (%p777) target = $region40
      $region39: #{ensemble_forward.2} parent=27 // pred_region
        %s780 = smul.u32 2, %s19
      $region40: #{ensemble_forward.2} parent=27 // pred_fallthru
        _
    $region28: #{ensemble_forward.2} parent=5 // pred_fallthru
      _
    %p781 = scmp.le.s32.totalorder 2, %s8
    // Predicated region
    $region41: #{ensemble_forward.2} parent=5 // pred_check
      %p782 = pneg %p781
    $region42: #{ensemble_forward.2} parent=5 // pred_check_branch
      %784 = sbr.rel (%p782) target = $region44
    $region43: #{ensemble_forward.2} parent=5 // pred_region
      %s785 = ssub.s32 %s8, 2
      // Predicated region
      $region45: #{ensemble_forward.2} parent=43 // pred_check
        %p786 = pneg %p112
      $region46: #{ensemble_forward.2} parent=43 // pred_check_branch
        %788 = sbr.rel (%p786) target = $region48
      $region47: #{ensemble_forward.2} parent=43 // pred_region
        %s789 = smul.u32 2, %s22
        %p790 = scmp.lt.s32.totalorder %s21, 1
        %s791 = scalar_select %p790, %s21, 1
        %p792 = scmp.lt.s32.totalorder %s789, 1
        %s793 = scalar_select %p792, %s789, 1
        %s794 = smul.addr %s791, 2
        %s795 = sadd.s32 %s793, %s794
        %s796 = scalar_lea.vmem %s2, %s795
      $region48: #{ensemble_forward.2} parent=43 // pred_fallthru
        _
    $region44: #{ensemble_forward.2} parent=5 // pred_fallthru
      _
  $region6: #{ensemble_forward.2} parent=0 // loop_footer
    %s12 = sadd.s32 1, %s8
  $region7: #{ensemble_forward.2} parent=0 // loop_footer_branch
    %7 = sbr.rel target = $region3
  $region8: #{ensemble_forward.2} parent=0 // loop_exit
    _

// kernel: ensemble_forward.3
$region0: #{ensemble_forward.3}
  #allocation0 [shape = 'u32[]', space=smem, size = 0x4, offset = 0x4, fixed_abs, tag = 'smem constant byte address 0x4 - core index']
  #allocation1 [shape = 'u32[144,128]{1,0:T(1,128)}', space=vmem, size = 0x12000, scoped, tag = 'internal scratch']
  %s0 = inlined_call_operand.vmem [shape: f32[2,256], index: 0, kind: input, shape index: {}]
  %s1 = inlined_call_operand.vmem [shape: bf16[128,128], index: 1, kind: input, shape index: {}]
  %s2 = inlined_call_operand.vmem [shape: f32[1,128], index: 2, kind: input, shape index: {}]
  %s3 = inlined_call_operand.vmem [shape: bf16[128,128], index: 3, kind: input, shape index: {}]
  %s4 = inlined_call_operand.vmem [shape: bf16[128,128], index: 4, kind: input, shape index: {}]
  %s5 = inlined_call_operand.vmem [shape: f32[1,128], index: 5, kind: input, shape index: {}]
  %s6 = inlined_call_operand.hbm [shape: f32[2,128], index: 6, kind: output, shape index: {}]
  %s7 = sld [smem:[#allocation0]]
  $region34: #{ensemble_forward.3} parent=0
    _
  %s9 = ssub.s32 1, %s7
  %s10 = scalar_select 0, %s9, %s7
  $region1: #{ensemble_forward.3} parent=0
    #allocation2 [shape = 'u8[1024]{0}', space=vmem, size = 0x400, scoped, tag = 'output window, operand 0, single buffered']
    #allocation3 [shape = 's32[1]{0}', space=sflag, size = 0x4, scoped, tag = 'scoped memory for ensemble_forward.3']
    %11 = vsyncpa [#allocation3], 0
    // Predicated region
    $region2: #{ensemble_forward.3} parent=1 // pred_check
      _
    $region3: #{ensemble_forward.3} parent=1 // pred_check_branch
      %13 = sbr.rel (0) target = $region5
    $region4: #{ensemble_forward.3} parent=1 // pred_region
      _
    $region5: #{ensemble_forward.3} parent=1 // pred_fallthru
      _
    // Predicated region
    $region6: #{ensemble_forward.3} parent=1 // pred_check
      _
    $region7: #{ensemble_forward.3} parent=1 // pred_check_branch
      %15 = sbr.rel (0) target = $region9
    $region8: #{ensemble_forward.3} parent=1 // pred_region
      _
    $region9: #{ensemble_forward.3} parent=1 // pred_fallthru
      _
    // Predicated region
    $region10: #{ensemble_forward.3} parent=1 // pred_check
      _
    $region11: #{ensemble_forward.3} parent=1 // pred_check_branch
      %17 = sbr.rel (0) target = $region13
    $region12: #{ensemble_forward.3} parent=1 // pred_region
      _
    $region13: #{ensemble_forward.3} parent=1 // pred_fallthru
      _
    // Predicated region
    $region14: #{ensemble_forward.3} parent=1 // pred_check
      _
    $region15: #{ensemble_forward.3} parent=1 // pred_check_branch
      %19 = sbr.rel (0) target = $region17
    $region16: #{ensemble_forward.3} parent=1 // pred_region
      _
    $region17: #{ensemble_forward.3} parent=1 // pred_fallthru
      _
    // Predicated region
    $region18: #{ensemble_forward.3} parent=1 // pred_check
      _
    $region19: #{ensemble_forward.3} parent=1 // pred_check_branch
      %21 = sbr.rel (0) target = $region21
    $region20: #{ensemble_forward.3} parent=1 // pred_region
      _
    $region21: #{ensemble_forward.3} parent=1 // pred_fallthru
      _
    // Predicated region
    $region22: #{ensemble_forward.3} parent=1 // pred_check
      _
    $region23: #{ensemble_forward.3} parent=1 // pred_check_branch
      %23 = sbr.rel (0) target = $region25
    $region24: #{ensemble_forward.3} parent=1 // pred_region
      _
    $region25: #{ensemble_forward.3} parent=1 // pred_fallthru
      _
    %v25 = vld [vmem:[%s0] sm:$0xf]
    %v28 = vunpack.c.l.s4 1983009808
    %v29 = vunpack.c.0.s8 %v28
    %v30 = vlaneseq
    %v31 = vshrl.u32 %v30, 7
    %v32 = vsub.s32 %v29, %v31
    %v33 = vrot.slane %v25, %v32
    %v34 = vcombine.high %v33, %v33
    %v36 = vpack.c.bf16 %v34, %v34
    %v37 = vld [vmem:[%s1] sm:$0xf]
    %v38 = vld [vmem:[%s1 + $0x4] sm:$0xf]
    %v39 = vld [vmem:[%s1 + $0x8] sm:$0xf]
    %v40 = vld [vmem:[%s1 + $0xc] sm:$0xf]
    %v41 = vld [vmem:[%s1 + $0x10] sm:$0xf]
    %v42 = vld [vmem:[%s1 + $0x14] sm:$0xf]
    %v43 = vld [vmem:[%s1 + $0x18] sm:$0xf]
    %v44 = vld [vmem:[%s1 + $0x1c] sm:$0xf]
    %v45 = vld [vmem:[%s1 + $0x20] sm:$0xf]
    %v46 = vld [vmem:[%s1 + $0x24] sm:$0xf]
    %v47 = vld [vmem:[%s1 + $0x28] sm:$0xf]
    %v48 = vld [vmem:[%s1 + $0x2c] sm:$0xf]
    %v49 = vld [vmem:[%s1 + $0x30] sm:$0xf]
    %v50 = vld [vmem:[%s1 + $0x34] sm:$0xf]
    %v51 = vld [vmem:[%s1 + $0x38] sm:$0xf]
    %v52 = vld [vmem:[%s1 + $0x3c] sm:$0xf]
    %v53 = vld [vmem:[%s2] sm:$0x1]
    %v55 = vlaneseq
    %v56 = vshrl.u32 %v55, 7
    %v57 = vsub.s32 0, %v56
    %v58 = vrot.slane %v53, %v57
    %v76 = vunpack.c.l.b16 %v37
    %v77 = vunpack.c.l.b16 %v38
    %v78 = vunpack.c.l.b16 %v39
    %v79 = vunpack.c.l.b16 %v40
    %v80 = vunpack.c.l.b16 %v41
    %v81 = vunpack.c.l.b16 %v42
    %v82 = vunpack.c.l.b16 %v43
    %v83 = vunpack.c.l.b16 %v44
    %v84 = vunpack.c.l.b16 %v45
    %v85 = vunpack.c.l.b16 %v46
    %v86 = vunpack.c.l.b16 %v47
    %v87 = vunpack.c.l.b16 %v48
    %v88 = vunpack.c.l.b16 %v49
    %v89 = vunpack.c.l.b16 %v50
    %v90 = vunpack.c.l.b16 %v51
    %v91 = vunpack.c.l.b16 %v52
    %v92 = vpack.c.b16 %v77, %v76
    %v93 = vpack.c.b16 %v79, %v78
    %v94 = vpack.c.b16 %v81, %v80
    %v95 = vpack.c.b16 %v83, %v82
    %v96 = vpack.c.b16 %v85, %v84
    %v97 = vpack.c.b16 %v87, %v86
    %v98 = vpack.c.b16 %v89, %v88
    %v99 = vpack.c.b16 %v91, %v90
    %108 = vmatprep.subr.bf16.mxu0 0
    %109 = vmatpush1.bf16.msra.mxu0 %v99
    %110 = vmatprep.subr.bf16.mxu0 0
    %111 = vmatpush1.bf16.msra.mxu0 %v98
    %112 = vmatprep.subr.bf16.mxu0 0
    %113 = vmatpush1.bf16.msra.mxu0 %v97
    %114 = vmatprep.subr.bf16.mxu0 0
    %115 = vmatpush1.bf16.msra.mxu0 %v96
    %116 = vmatprep.subr.bf16.mxu0 0
    %117 = vmatpush1.bf16.msra.mxu0 %v95
    %118 = vmatprep.subr.bf16.mxu0 0
    %119 = vmatpush1.bf16.msra.mxu0 %v94
    %120 = vmatprep.subr.bf16.mxu0 0
    %121 = vmatpush1.bf16.msra.mxu0 %v93
    %122 = vmatprep.subr.bf16.mxu0 0
    %123 = vmatpush1.bf16.msra.mxu0 %v92
    %124 = vmatprep.subr.bf16.mxu0 0
    %125 = vmatpush2.bf16.msra.mxu0 0
    %126 = vmatprep.subr.bf16.mxu0 0
    %127 = vmatpush2.bf16.msra.mxu0 0
    %128 = vmatprep.subr.bf16.mxu0 0
    %129 = vmatpush2.bf16.msra.mxu0 0
    %130 = vmatprep.subr.bf16.mxu0 0
    %131 = vmatpush2.bf16.msra.mxu0 0
    %132 = vmatprep.subr.bf16.mxu0 0
    %133 = vmatpush2.bf16.msra.mxu0 0
    %134 = vmatprep.subr.bf16.mxu0 0
    %135 = vmatpush2.bf16.msra.mxu0 0
    %136 = vmatprep.subr.bf16.mxu0 0
    %137 = vmatpush2.bf16.msra.mxu0 0
    %138 = vmatprep.subr.bf16.mxu0 0
    %139 = vmatpush2.bf16.msra.mxu0 0
    %140 = vmatprep.mubr.bf16.mxu0 0
    %141 = vmatmul.mubr.bf16.gmra.mxu0 %v36
    %v142 = vpop.f32.mrf.mxu0
    %v143 = vadd.f32 %v58, %v142
    %v144 = vpop.f32.mrf.mxu0
    %v145 = vpop.f32.mrf.mxu0
    %v146 = vpop.f32.mrf.mxu0
    %147 = vdwg.mxu0
    %v148 = vmax.f32 %v25, 0.0
    %v149 = vpack.c.bf16 %v148, %v148
    %v150 = vmax.f32 %v143, 0.0
    %v151 = vpack.c.bf16 %v150, %v150
    %v152 = vld [vmem:[%s3] sm:$0xf]
    %v153 = vld [vmem:[%s3 + $0x4] sm:$0xf]
    %v154 = vld [vmem:[%s3 + $0x8] sm:$0xf]
    %v155 = vld [vmem:[%s3 + $0xc] sm:$0xf]
    %v156 = vld [vmem:[%s3 + $0x10] sm:$0xf]
    %v157 = vld [vmem:[%s3 + $0x14] sm:$0xf]
    %v158 = vld [vmem:[%s3 + $0x18] sm:$0xf]
    %v159 = vld [vmem:[%s3 + $0x1c] sm:$0xf]
    %v160 = vld [vmem:[%s3 + $0x20] sm:$0xf]
    %v161 = vld [vmem:[%s3 + $0x24] sm:$0xf]
    %v162 = vld [vmem:[%s3 + $0x28] sm:$0xf]
    %v163 = vld [vmem:[%s3 + $0x2c] sm:$0xf]
    %v164 = vld [vmem:[%s3 + $0x30] sm:$0xf]
    %v165 = vld [vmem:[%s3 + $0x34] sm:$0xf]
    %v166 = vld [vmem:[%s3 + $0x38] sm:$0xf]
    %v167 = vld [vmem:[%s3 + $0x3c] sm:$0xf]
    %v168 = vld [vmem:[%s4] sm:$0xf]
    %v169 = vld [vmem:[%s4 + $0x4] sm:$0xf]
    %v170 = vld [vmem:[%s4 + $0x8] sm:$0xf]
    %v171 = vld [vmem:[%s4 + $0xc] sm:$0xf]
    %v172 = vld [vmem:[%s4 + $0x10] sm:$0xf]
    %v173 = vld [vmem:[%s4 + $0x14] sm:$0xf]
    %v174 = vld [vmem:[%s4 + $0x18] sm:$0xf]
    %v175 = vld [vmem:[%s4 + $0x1c] sm:$0xf]
    %v176 = vld [vmem:[%s4 + $0x20] sm:$0xf]
    %v177 = vld [vmem:[%s4 + $0x24] sm:$0xf]
    %v178 = vld [vmem:[%s4 + $0x28] sm:$0xf]
    %v179 = vld [vmem:[%s4 + $0x2c] sm:$0xf]
    %v180 = vld [vmem:[%s4 + $0x30] sm:$0xf]
    %v181 = vld [vmem:[%s4 + $0x34] sm:$0xf]
    %v182 = vld [vmem:[%s4 + $0x38] sm:$0xf]
    %v183 = vld [vmem:[%s4 + $0x3c] sm:$0xf]
    %v200 = vunpack.c.l.b16 %v168
    %v201 = vunpack.c.l.b16 %v169
    %v202 = vunpack.c.l.b16 %v170
    %v203 = vunpack.c.l.b16 %v171
    %v204 = vunpack.c.l.b16 %v172
    %v205 = vunpack.c.l.b16 %v173
    %v206 = vunpack.c.l.b16 %v174
    %v207 = vunpack.c.l.b16 %v175
    %v208 = vunpack.c.l.b16 %v176
    %v209 = vunpack.c.l.b16 %v177
    %v210 = vunpack.c.l.b16 %v178
    %v211 = vunpack.c.l.b16 %v179
    %v212 = vunpack.c.l.b16 %v180
    %v213 = vunpack.c.l.b16 %v181
    %v214 = vunpack.c.l.b16 %v182
    %v215 = vunpack.c.l.b16 %v183
    %v216 = vpack.c.b16 %v201, %v200
    %v217 = vpack.c.b16 %v203, %v202
    %v218 = vpack.c.b16 %v205, %v204
    %v219 = vpack.c.b16 %v207, %v206
    %v220 = vpack.c.b16 %v209, %v208
    %v221 = vpack.c.b16 %v211, %v210
    %v222 = vpack.c.b16 %v213, %v212
    %v223 = vpack.c.b16 %v215, %v214
    %232 = vmatprep.subr.bf16.mxu0 0
    %233 = vmatpush1.bf16.msra.mxu0 %v223
    %234 = vmatprep.subr.bf16.mxu0 0
    %235 = vmatpush1.bf16.msra.mxu0 %v222
    %236 = vmatprep.subr.bf16.mxu0 0
    %237 = vmatpush1.bf16.msra.mxu0 %v221
    %238 = vmatprep.subr.bf16.mxu0 0
    %239 = vmatpush1.bf16.msra.mxu0 %v220
    %240 = vmatprep.subr.bf16.mxu0 0
    %241 = vmatpush1.bf16.msra.mxu0 %v219
    %242 = vmatprep.subr.bf16.mxu0 0
    %243 = vmatpush1.bf16.msra.mxu0 %v218
    %244 = vmatprep.subr.bf16.mxu0 0
    %245 = vmatpush1.bf16.msra.mxu0 %v217
    %246 = vmatprep.subr.bf16.mxu0 0
    %247 = vmatpush1.bf16.msra.mxu0 %v216
    %248 = vmatprep.subr.bf16.mxu0 0
    %249 = vmatpush2.bf16.msra.mxu0 0
    %250 = vmatprep.subr.bf16.mxu0 0
    %251 = vmatpush2.bf16.msra.mxu0 0
    %252 = vmatprep.subr.bf16.mxu0 0
    %253 = vmatpush2.bf16.msra.mxu0 0
    %254 = vmatprep.subr.bf16.mxu0 0
    %255 = vmatpush2.bf16.msra.mxu0 0
    %256 = vmatprep.subr.bf16.mxu0 0
    %257 = vmatpush2.bf16.msra.mxu0 0
    %258 = vmatprep.subr.bf16.mxu0 0
    %259 = vmatpush2.bf16.msra.mxu0 0
    %260 = vmatprep.subr.bf16.mxu0 0
    %261 = vmatpush2.bf16.msra.mxu0 0
    %262 = vmatprep.subr.bf16.mxu0 0
    %263 = vmatpush2.bf16.msra.mxu0 0
    %264 = vmatprep.mubr.bf16.mxu0 0
    %265 = vmatmul.mubr.bf16.gmra.mxu0 %v151
    %v266 = vpop.f32.mrf.mxu0
    %v267 = vadd.f32 0.0, %v266
    %v268 = vpop.f32.mrf.mxu0
    %v269 = vpop.f32.mrf.mxu0
    %v270 = vpop.f32.mrf.mxu0
    %271 = vdwg.mxu0
    %v288 = vunpack.c.l.b16 %v152
    %v289 = vunpack.c.l.b16 %v153
    %v290 = vunpack.c.l.b16 %v154
    %v291 = vunpack.c.l.b16 %v155
    %v292 = vunpack.c.l.b16 %v156
    %v293 = vunpack.c.l.b16 %v157
    %v294 = vunpack.c.l.b16 %v158
    %v295 = vunpack.c.l.b16 %v159
    %v296 = vunpack.c.l.b16 %v160
    %v297 = vunpack.c.l.b16 %v161
    %v298 = vunpack.c.l.b16 %v162
    %v299 = vunpack.c.l.b16 %v163
    %v300 = vunpack.c.l.b16 %v164
    %v301 = vunpack.c.l.b16 %v165
    %v302 = vunpack.c.l.b16 %v166
    %v303 = vunpack.c.l.b16 %v167
    %v304 = vpack.c.b16 %v289, %v288
    %v305 = vpack.c.b16 %v291, %v290
    %v306 = vpack.c.b16 %v293, %v292
    %v307 = vpack.c.b16 %v295, %v294
    %v308 = vpack.c.b16 %v297, %v296
    %v309 = vpack.c.b16 %v299, %v298
    %v310 = vpack.c.b16 %v301, %v300
    %v311 = vpack.c.b16 %v303, %v302
    %320 = vmatprep.subr.bf16.mxu0 0
    %321 = vmatpush1.bf16.msra.mxu0 %v311
    %322 = vmatprep.subr.bf16.mxu0 0
    %323 = vmatpush1.bf16.msra.mxu0 %v310
    %324 = vmatprep.subr.bf16.mxu0 0
    %325 = vmatpush1.bf16.msra.mxu0 %v309
    %326 = vmatprep.subr.bf16.mxu0 0
    %327 = vmatpush1.bf16.msra.mxu0 %v308
    %328 = vmatprep.subr.bf16.mxu0 0
    %329 = vmatpush1.bf16.msra.mxu0 %v307
    %330 = vmatprep.subr.bf16.mxu0 0
    %331 = vmatpush1.bf16.msra.mxu0 %v306
    %332 = vmatprep.subr.bf16.mxu0 0
    %333 = vmatpush1.bf16.msra.mxu0 %v305
    %334 = vmatprep.subr.bf16.mxu0 0
    %335 = vmatpush1.bf16.msra.mxu0 %v304
    %336 = vmatprep.subr.bf16.mxu0 0
    %337 = vmatpush2.bf16.msra.mxu0 0
    %338 = vmatprep.subr.bf16.mxu0 0
    %339 = vmatpush2.bf16.msra.mxu0 0
    %340 = vmatprep.subr.bf16.mxu0 0
    %341 = vmatpush2.bf16.msra.mxu0 0
    %342 = vmatprep.subr.bf16.mxu0 0
    %343 = vmatpush2.bf16.msra.mxu0 0
    %344 = vmatprep.subr.bf16.mxu0 0
    %345 = vmatpush2.bf16.msra.mxu0 0
    %346 = vmatprep.subr.bf16.mxu0 0
    %347 = vmatpush2.bf16.msra.mxu0 0
    %348 = vmatprep.subr.bf16.mxu0 0
    %349 = vmatpush2.bf16.msra.mxu0 0
    %350 = vmatprep.subr.bf16.mxu0 0
    %351 = vmatpush2.bf16.msra.mxu0 0
    %352 = vmatprep.mubr.bf16.mxu0 0
    %353 = vmatmul.mubr.bf16.gmra.mxu0 %v149
    %v354 = vpop.f32.mrf.mxu0
    %v355 = vadd.f32 %v267, %v354
    %v356 = vpop.f32.mrf.mxu0
    %v357 = vpop.f32.mrf.mxu0
    %v358 = vpop.f32.mrf.mxu0
    %359 = vdwg.mxu0
    %v360 = vld [vmem:[%s5] sm:$0x1]
    %v362 = vlaneseq
    %v363 = vshrl.u32 %v362, 7
    %v364 = vsub.s32 0, %v363
    %v365 = vrot.slane %v360, %v364
    %v367 = vadd.f32 %v355, %v365
    %368 = vst [vmem:[#allocation2] sm:$0x3] %v367
    // Predicated region
    $region26: #{ensemble_forward.3} parent=1 // pred_check
      _
    $region27: #{ensemble_forward.3} parent=1 // pred_check_branch
      %370 = sbr.rel (0) target = $region29
    $region28: #{ensemble_forward.3} parent=1 // pred_region
      %s372 = ssub.s32 32, 32
      %373 = vsyncadd [#allocation3], %s372
      %s375 = sshll.u32 [#allocation2], 4
      %s376 = int_to_ptr.vmem [resolvable:$true] %s375
      %378 = dma.vmem_to_hbm [thread:$0]  %s376, 32, %s6, [#allocation3]
    $region29: #{ensemble_forward.3} parent=1 // pred_fallthru
      _
    // Predicated region
    $region30: #{ensemble_forward.3} parent=1 // pred_check
      _
    $region31: #{ensemble_forward.3} parent=1 // pred_check_branch
      %380 = sbr.rel (0) target = $region33
    $region32: #{ensemble_forward.3} parent=1 // pred_region
      %381 = dma.done [#allocation3], 32
    $region33: #{ensemble_forward.3} parent=1 // pred_fallthru
      _
    %382 = vsyncpa [#allocation3], 1

</llo_original>
